<compile_context>
chip_gen: v7x
topology: tpu7x:2x2x1
jax: 0.10.0
libtpu: 0.0.40
codegen_flags: <defaults>
</compile_context>

<pallas_src>
import functools

import jax
import jax.numpy as jnp
from jax.experimental import pallas as pl
from jax.experimental.pallas import tpu as pltpu


_MASK_BIAS = 1e30  # additive mask; exp args stay <= 0 so no overflow possible


# --------------------- kernel 1: projection + packed alpha ---------------------

def proj_alpha_kernel(x_ref, w_ref, apack_ref, xp_ref, alpha_ref):
    """x_proj = x @ W ; alphas = x_proj @ A_pack  (one row tile of nodes).

    x_ref     : [TM, F_in]
    w_ref     : [F_in, H*C]   (resident)
    apack_ref : [H*C, 2*H]    (resident, block-diag packing of attn_src/attn_dst)
    xp_ref    : [TM, H*C]     out (bf16)
    alpha_ref : [TM, 2*H]     out (f32; cols [:H] = alpha_src, [H:] = alpha_dst)
    """
    xp = jnp.dot(x_ref[...], w_ref[...], preferred_element_type=jnp.float32)
    alpha_ref[...] = jnp.dot(xp, apack_ref[...], preferred_element_type=jnp.float32)
    xp_ref[...] = xp.astype(xp_ref.dtype)


# --------------------- kernel 2: masked attention + aggregation ---------------------

def gat_attn_kernel(asrc_ref, adst_ref, xp_ref, adj_ref, bias_ref, out_ref,
                    m_sc, l_sc, acc_sc, *, heads, out_ch, negative_slope, activation):
    """Flash-style masked attention over one (dst-row-tile, src-col-tile) block.

    asrc_ref : [H, TK]      alpha_src for this src block (head-major, f32)
    adst_ref : [TM, H]      alpha_dst for this dst row tile (f32)
    xp_ref   : [H, TK, C]   projected src features for this src block (bf16)
    adj_ref  : [TM, TK]     bf16 0/1 mask, adj[i, j] = 1 iff edge j -> i
    bias_ref : [1, H*C]
    out_ref  : [TM, H*C]    written exactly once, at the last src block
    m_sc     : [H, TM, 1]   running max        (VMEM scratch)
    l_sc     : [H, TM, 1]   running sum        (VMEM scratch)
    acc_sc   : [H, TM, C]   running aggregate  (VMEM scratch)
    """
    k = pl.program_id(1)

    @pl.when(k == 0)
    def _():
        m_sc[...] = jnp.full(m_sc.shape, -jnp.inf, jnp.float32)
        l_sc[...] = jnp.zeros(l_sc.shape, jnp.float32)
        acc_sc[...] = jnp.zeros(acc_sc.shape, jnp.float32)

    adst = adst_ref[...]                                            # [TM, H]
    asrc = asrc_ref[...]                                            # [H, TK]
    # additive mask bias: 0 on edges, -1e30 elsewhere (applied AFTER leaky_relu,
    # BEFORE the running max -> exactly the reference per-segment softmax).
    neg = (adj_ref[...].astype(jnp.float32) - 1.0) * _MASK_BIAS     # [TM, TK]

    # s[h, i, j] = alpha_dst[i, h] + alpha_src[h, j], batched over heads.
    s = jnp.stack([adst[:, h:h + 1] + asrc[h:h + 1, :] for h in range(heads)],
                  axis=0)                                           # [H, TM, TK]
    s = jnp.where(s > 0, s, negative_slope * s)                     # leaky_relu
    s = s + neg[None, :, :]                                         # mask

    # Online softmax (all exp arguments <= 0 by construction).
    m_prev = m_sc[...]
    m_new = jnp.maximum(m_prev, jnp.max(s, axis=-1, keepdims=True))   # [H, TM, 1]
    corr = jnp.exp(m_prev - m_new)
    p = jnp.exp(s - m_new)                                             # [H, TM, TK]
    l_sc[...] = corr * l_sc[...] + jnp.sum(p, axis=-1, keepdims=True)
    # p @ V, heads batched, bf16 operands / f32 accumulate (canonical MXU shape).
    acc_sc[...] = corr * acc_sc[...] + jax.lax.dot_general(
        p.astype(xp_ref.dtype), xp_ref[...],
        (((2,), (1,)), ((0,), (0,))),
        preferred_element_type=jnp.float32)                            # [H, TM, C]
    m_sc[...] = m_new

    @pl.when(k == pl.num_programs(1) - 1)
    def _():
        # Guarded denominator: fully-masked (padded) rows yield finite junk
        # (discarded by the wrapper), never NaN.  approx recip -> EUP slot.
        inv_l = pl.reciprocal(jnp.maximum(l_sc[...], 1e-20), approx=True)
        o3 = acc_sc[...] * inv_l                                        # [H, TM, C]
        o = jnp.concatenate([o3[h] for h in range(heads)], axis=-1)     # [TM, H*C]
        o = o + bias_ref[...]
        if activation == "elu":
            o = jnp.where(o > 0, o, jnp.exp(o) - 1.0)
        elif activation == "softmax":
            o = o - jnp.max(o, axis=-1, keepdims=True)
            e = jnp.exp(o)
            o = e * pl.reciprocal(jnp.sum(e, axis=-1, keepdims=True))   # exact recip
        out_ref[...] = o.astype(out_ref.dtype)


# ------------------------------ layer wrapper ------------------------------

def _pack_attn(attn_src, attn_dst):
    """[H, C] x 2 -> block-diagonal [H*C, 2*H] so x_proj @ A_pack = [alpha_src | alpha_dst]."""
    h, c = attn_src.shape
    eye = jnp.eye(h, dtype=jnp.float32)
    a_src = (attn_src[:, :, None] * eye[:, None, :]).reshape(h * c, h)
    a_dst = (attn_dst[:, :, None] * eye[:, None, :]).reshape(h * c, h)
    return jnp.concatenate([a_src, a_dst], axis=1)


def gat_conv_layer(x, w, attn_src, attn_dst, adj, bias, *, heads, out_ch,
                   negative_slope=0.2, activation=None, block_m=128, block_k=128):
    """One MyGATConv2 layer (concat=True) on a padded, dense bf16 adjacency mask."""
    n_pad, f_in = x.shape
    hc = heads * out_ch
    tm = min(block_m, n_pad)
    tk = min(block_k, n_pad)
    assert n_pad % tm == 0 and n_pad % tk == 0

    # ---- kernel 1: projection + packed alpha scores (row-tiled) ----
    a_pack = _pack_attn(attn_src, attn_dst)                            # [H*C, 2H]
    cost1 = pl.CostEstimate(
        flops=2 * n_pad * f_in * hc + 2 * n_pad * hc * 2 * heads,
        transcendentals=0,
        bytes_accessed=4 * (n_pad * f_in + f_in * hc + hc * 2 * heads
                            + n_pad * 2 * heads) + 2 * n_pad * hc)
    x_proj, alphas = pl.pallas_call(
        proj_alpha_kernel,
        out_shape=(jax.ShapeDtypeStruct((n_pad, hc), jnp.bfloat16),
                   jax.ShapeDtypeStruct((n_pad, 2 * heads), jnp.float32)),
        grid_spec=pltpu.PrefetchScalarGridSpec(
            num_scalar_prefetch=0,
            grid=(n_pad // tm,),
            in_specs=[pl.BlockSpec((tm, f_in), lambda i: (i, 0)),
                      pl.BlockSpec((f_in, hc), lambda i: (0, 0)),
                      pl.BlockSpec((hc, 2 * heads), lambda i: (0, 0))],
            out_specs=[pl.BlockSpec((tm, hc), lambda i: (i, 0)),
                       pl.BlockSpec((tm, 2 * heads), lambda i: (i, 0))]),
        compiler_params=pltpu.CompilerParams(
            dimension_semantics=("parallel",),
            vmem_limit_bytes=48 * 1024 * 1024),
        cost_estimate=cost1,
    )(x, w, a_pack)

    # ---- wrapper-side layout plumbing (XLA): head-major views ----
    asrc_t = alphas[:, :heads].T                                        # [H, N_pad]
    adst = alphas[:, heads:]                                            # [N_pad, H]
    xp_hm = x_proj.reshape(n_pad, heads, out_ch).transpose(1, 0, 2)     # [H, N_pad, C] bf16

    # ---- kernel 2: masked attention softmax + aggregation ----
    kernel = functools.partial(
        gat_attn_kernel, heads=heads, out_ch=out_ch,
        negative_slope=negative_slope, activation=activation)
    cost2 = pl.CostEstimate(
        flops=2 * heads * n_pad * n_pad * out_ch + 10 * heads * n_pad * n_pad,
        transcendentals=heads * n_pad * n_pad + n_pad * hc,
        bytes_accessed=2 * n_pad * n_pad
        + 2 * (n_pad // tm) * heads * n_pad * out_ch
        + 4 * (3 * n_pad * heads + n_pad * hc))
    out = pl.pallas_call(
        kernel,
        out_shape=jax.ShapeDtypeStruct((n_pad, hc), jnp.float32),
        grid_spec=pltpu.PrefetchScalarGridSpec(
            num_scalar_prefetch=0,
            grid=(n_pad // tm, n_pad // tk),
            in_specs=[pl.BlockSpec((heads, tk), lambda i, k: (0, k)),
                      pl.BlockSpec((tm, heads), lambda i, k: (i, 0)),
                      pl.BlockSpec((heads, tk, out_ch), lambda i, k: (0, k, 0)),
                      pl.BlockSpec((tm, tk), lambda i, k: (i, k)),
                      pl.BlockSpec((1, hc), lambda i, k: (0, 0))],
            out_specs=pl.BlockSpec((tm, hc), lambda i, k: (i, 0)),
            scratch_shapes=[pltpu.VMEM((heads, tm, 1), jnp.float32),
                            pltpu.VMEM((heads, tm, 1), jnp.float32),
                            pltpu.VMEM((heads, tm, out_ch), jnp.float32)]),
        compiler_params=pltpu.CompilerParams(
            dimension_semantics=("parallel", "arbitrary"),
            vmem_limit_bytes=48 * 1024 * 1024),
        cost_estimate=cost2,
    )(asrc_t, adst, xp_hm, adj, bias)
    return out


# --------------------------- parameter init (glorot) ---------------------------

def _glorot(key, shape, fan_in, fan_out):
    a = jnp.sqrt(6.0 / (fan_in + fan_out))
    return jax.random.uniform(key, shape, jnp.float32, -a, a)


def init_mygat2_params(key, in_channels, hidden_channels, out_channels, heads):
    k = jax.random.split(key, 6)
    hc0 = heads * hidden_channels
    return {
        # layer 0: MyGATConv2(in_channels, hidden_channels, heads)
        "w0": _glorot(k[0], (in_channels, hc0), in_channels, hc0),     # lin_src.weight^T
        "asrc0": _glorot(k[1], (heads, hidden_channels), heads, hidden_channels),
        "adst0": _glorot(k[2], (heads, hidden_channels), heads, hidden_channels),
        "b0": jnp.zeros((1, hc0), jnp.float32),
        # layer 1 (last): MyGATConv2(hidden*heads, out_channels, heads=1)
        "w1": _glorot(k[3], (hc0, out_channels), hc0, out_channels),
        "asrc1": _glorot(k[4], (1, out_channels), 1, out_channels),
        "adst1": _glorot(k[5], (1, out_channels), 1, out_channels),
        "b1": jnp.zeros((1, out_channels), jnp.float32),
    }


# --------------------------- model forward (glue) ---------------------------

def edge_index_to_adj(edge_index, num_nodes, num_nodes_padded):
    """Dense bf16 adjacency mask adj[dst, src] (remove_self_loops + add_self_loops)."""
    src, dst = edge_index[0], edge_index[1]
    adj = jnp.zeros((num_nodes_padded, num_nodes_padded), jnp.float32).at[dst, src].set(1.0)
    diag = jnp.arange(num_nodes)
    adj = adj.at[diag, diag].set(1.0)   # remove + re-add self loops (real nodes only)
    return adj.astype(jnp.bfloat16)


def mygat2_forward(params, x, edge_index, *, hidden_channels, out_channels, heads,
                   block=128):
    num_nodes = x.shape[0]
    n_pad = ((num_nodes + block - 1) // block) * block
    adj = edge_index_to_adj(edge_index, num_nodes, n_pad)
    x_pad = jnp.zeros((n_pad, x.shape[1]), jnp.float32).at[:num_nodes].set(x)

    # layer 0 + ELU (dropout is identity in eval mode)
    h = gat_conv_layer(x_pad, params["w0"], params["asrc0"], params["adst0"], adj,
                       params["b0"], heads=heads, out_ch=hidden_channels,
                       activation="elu", block_m=block, block_k=block)
    # last layer (heads=1) + softmax(dim=-1)
    out = gat_conv_layer(h, params["w1"], params["asrc1"], params["adst1"], adj,
                         params["b1"], heads=1, out_ch=out_channels,
                         activation="softmax", block_m=block, block_k=block)
    return out[:num_nodes]


if __name__ == "__main__":
    in_channels = 16
    hidden_channels = 8
    out_channels = 4
    heads = 8
    num_nodes = 16
    num_edges = 32

    key = jax.random.PRNGKey(0)
    kx, ke_s, ke_d, kp = jax.random.split(key, 4)

    x = jax.random.normal(kx, (num_nodes, in_channels), jnp.float32)
    src = jax.random.randint(ke_s, (num_edges,), 0, num_nodes)
    dst = jax.random.randint(ke_d, (num_edges,), 0, num_nodes)
    edge_index = jnp.stack([src, dst])  # [2, E]

    params = init_mygat2_params(kp, in_channels, hidden_channels, out_channels, heads)

    out = mygat2_forward(params, x, edge_index,
                         hidden_channels=hidden_channels,
                         out_channels=out_channels,
                         heads=heads)
    out = jax.block_until_ready(out)

    assert out.shape == (num_nodes, out_channels)
    assert bool(jnp.all(jnp.isfinite(out)))
    # rows of the final softmax must sum to ~1
    assert bool(jnp.all(jnp.abs(jnp.sum(out, axis=-1) - 1.0) < 1e-4))
    print("KERNEL_OK")
</pallas_src>

<mosaic_0001>
module attributes {stable_mosaic.version = 11 : i64} {
  func.func @proj_alpha_kernel(%arg0: i32, %arg1: memref<128x16xf32, #tpu.memory_space<vmem>>, %arg2: memref<16x64xf32, #tpu.memory_space<vmem>>, %arg3: memref<64x16xf32, #tpu.memory_space<vmem>>, %arg4: memref<128x64xbf16, #tpu.memory_space<vmem>>, %arg5: memref<128x16xf32, #tpu.memory_space<vmem>>) attributes {dimension_semantics = [#tpu.dimension_semantics<parallel>], iteration_bounds = array<i64: 1>, scalar_prefetch = 0 : i64, scratch_operands = 0 : i64, tpu.core_type = #tpu.core_type<tc>, window_params = [{transform_indices = @transform_0, window_bounds = array<i64: 128, 16>}, {pipeline_mode = #tpu.pipeline_mode<synchronous>, transform_indices = @transform_1, window_bounds = array<i64: 16, 64>}, {pipeline_mode = #tpu.pipeline_mode<synchronous>, transform_indices = @transform_2, window_bounds = array<i64: 64, 16>}, {transform_indices = @transform_3, window_bounds = array<i64: 128, 64>}, {transform_indices = @transform_4, window_bounds = array<i64: 128, 16>}]} {
    %c0 = arith.constant 0 : index
    %c0_0 = arith.constant 0 : index
    %0 = vector.load %arg1[%c0, %c0_0] : memref<128x16xf32, #tpu.memory_space<vmem>>, vector<128x16xf32>
    %c0_1 = arith.constant 0 : index
    %c0_2 = arith.constant 0 : index
    %1 = vector.load %arg2[%c0_1, %c0_2] : memref<16x64xf32, #tpu.memory_space<vmem>>, vector<16x64xf32>
    %cst = arith.constant dense<0.000000e+00> : vector<128x64xf32>
    %2 = tpu.matmul %0, %1, %cst {dimension_numbers = #tpu.dot_dimension_numbers<[1], [0], [0], [1], [0, 0, 1, 1], [], []>} : vector<128x16xf32>, vector<16x64xf32>, vector<128x64xf32> -> vector<128x64xf32>
    %c0_3 = arith.constant 0 : index
    %c0_4 = arith.constant 0 : index
    %3 = vector.load %arg3[%c0_3, %c0_4] : memref<64x16xf32, #tpu.memory_space<vmem>>, vector<64x16xf32>
    %cst_5 = arith.constant dense<0.000000e+00> : vector<128x16xf32>
    %4 = tpu.matmul %2, %3, %cst_5 {dimension_numbers = #tpu.dot_dimension_numbers<[1], [0], [0], [1], [0, 0, 1, 1], [], []>} : vector<128x64xf32>, vector<64x16xf32>, vector<128x16xf32> -> vector<128x16xf32>
    %c0_6 = arith.constant 0 : index
    %c0_7 = arith.constant 0 : index
    %5 = vector.load %arg5[%c0_6, %c0_7] : memref<128x16xf32, #tpu.memory_space<vmem>>, vector<128x16xf32>
    tpu.vector_store %arg5[%c0_6, %c0_7], %4 {strides = array<i32>} : memref<128x16xf32, #tpu.memory_space<vmem>>, vector<128x16xf32>,
    %6 = arith.truncf %2 : vector<128x64xf32> to vector<128x64xbf16>
    %c0_8 = arith.constant 0 : index
    %c0_9 = arith.constant 0 : index
    %7 = vector.load %arg4[%c0_8, %c0_9] : memref<128x64xbf16, #tpu.memory_space<vmem>>, vector<128x64xbf16>
    tpu.vector_store %arg4[%c0_8, %c0_9], %6 {strides = array<i32>} : memref<128x64xbf16, #tpu.memory_space<vmem>>, vector<128x64xbf16>,
    return
  }
  func.func @transform_0(%arg0: i32) -> (i32, i32) {
    %c0_i32 = arith.constant 0 : i32
    %c0_i32_0 = arith.constant 0 : i32
    return %arg0, %c0_i32 : i32, i32
  }
  func.func @transform_1(%arg0: i32) -> (i32, i32) {
    %c0_i32 = arith.constant 0 : i32
    %c0_i32_0 = arith.constant 0 : i32
    %c0_i32_1 = arith.constant 0 : i32
    return %c0_i32, %c0_i32_0 : i32, i32
  }
  func.func @transform_2(%arg0: i32) -> (i32, i32) {
    %c0_i32 = arith.constant 0 : i32
    %c0_i32_0 = arith.constant 0 : i32
    %c0_i32_1 = arith.constant 0 : i32
    return %c0_i32, %c0_i32_0 : i32, i32
  }
  func.func @transform_3(%arg0: i32) -> (i32, i32) {
    %c0_i32 = arith.constant 0 : i32
    %c0_i32_0 = arith.constant 0 : i32
    return %arg0, %c0_i32 : i32, i32
  }
  func.func @transform_4(%arg0: i32) -> (i32, i32) {
    %c0_i32 = arith.constant 0 : i32
    %c0_i32_0 = arith.constant 0 : i32
    return %arg0, %c0_i32 : i32, i32
  }
}

</mosaic_0001>

<llo_original>
// kernel: tpu_custom_call.1
$region0: #{tpu_custom_call.1}
  #allocation0 [shape = 'u32[]', space=smem, size = 0x4, offset = 0x4, fixed_abs, tag = 'smem constant byte address 0x4 - core index']
  #allocation1 [shape = 'u32[144,128]{1,0:T(1,128)}', space=vmem, size = 0x12000, scoped, tag = 'internal scratch']
  %s0 = inlined_call_operand.vmem [shape: f32[128,16], index: 0, kind: input, shape index: {}]
  %s1 = inlined_call_operand.vmem [shape: f32[16,64], index: 1, kind: input, shape index: {}]
  %s2 = inlined_call_operand.vmem [shape: f32[64,16], index: 2, kind: input, shape index: {}]
  %s3 = inlined_call_operand.vmem [shape: bf16[128,64], index: 3, kind: output, shape index: {0}]
  %s4 = inlined_call_operand.vmem [shape: f32[128,16], index: 4, kind: output, shape index: {1}]
  %5 = xla_tuple %s3, %s4
  %s6 = sld [smem:[#allocation0]]
  $region30: #{tpu_custom_call.1} parent=0
    _
  %s8 = ssub.s32 1, %s6
  %s9 = scalar_select 0, %s8, %s6
  // Predicated region
  $region2: #{tpu_custom_call.1} parent=0 // pred_check
    _
  $region3: #{tpu_custom_call.1} parent=0 // pred_check_branch
    %11 = sbr.rel (0) target = $region5
  $region4: #{tpu_custom_call.1} parent=0 // pred_region
    _
  $region5: #{tpu_custom_call.1} parent=0 // pred_fallthru
    _
  // Predicated region
  $region6: #{tpu_custom_call.1} parent=0 // pred_check
    _
  $region7: #{tpu_custom_call.1} parent=0 // pred_check_branch
    %13 = sbr.rel (0) target = $region9
  $region8: #{tpu_custom_call.1} parent=0 // pred_region
    _
  $region9: #{tpu_custom_call.1} parent=0 // pred_fallthru
    _
  // Predicated region
  $region10: #{tpu_custom_call.1} parent=0 // pred_check
    _
  $region11: #{tpu_custom_call.1} parent=0 // pred_check_branch
    %15 = sbr.rel (0) target = $region13
  $region12: #{tpu_custom_call.1} parent=0 // pred_region
    _
  $region13: #{tpu_custom_call.1} parent=0 // pred_fallthru
    _
  %v16 = vld [vmem:[%s0] sm:$0xff]
  %v17 = vld [vmem:[%s0 + $0x8] sm:$0xff]
  %v18 = vld [vmem:[%s0 + $0x10] sm:$0xff]
  %v19 = vld [vmem:[%s0 + $0x18] sm:$0xff]
  %v20 = vld [vmem:[%s0 + $0x20] sm:$0xff]
  %v21 = vld [vmem:[%s0 + $0x28] sm:$0xff]
  %v22 = vld [vmem:[%s0 + $0x30] sm:$0xff]
  %v23 = vld [vmem:[%s0 + $0x38] sm:$0xff]
  %v24 = vld [vmem:[%s0 + $0x40] sm:$0xff]
  %v25 = vld [vmem:[%s0 + $0x48] sm:$0xff]
  %v26 = vld [vmem:[%s0 + $0x50] sm:$0xff]
  %v27 = vld [vmem:[%s0 + $0x58] sm:$0xff]
  %v28 = vld [vmem:[%s0 + $0x60] sm:$0xff]
  %v29 = vld [vmem:[%s0 + $0x68] sm:$0xff]
  %v30 = vld [vmem:[%s0 + $0x70] sm:$0xff]
  %v31 = vld [vmem:[%s0 + $0x78] sm:$0xff]
  %v32 = vld [vmem:[%s1] sm:$0xff]
  %v33 = vld [vmem:[%s1 + $0x8] sm:$0xff]
  %vm34 = vcmask 130048
  %v36 = vsel %vm34, %v16, 0
  %v39 = vsel %vm34, %v17, 0
  %v42 = vsel %vm34, %v18, 0
  %v45 = vsel %vm34, %v19, 0
  %v48 = vsel %vm34, %v20, 0
  %v51 = vsel %vm34, %v21, 0
  %v54 = vsel %vm34, %v22, 0
  %v57 = vsel %vm34, %v23, 0
  %v60 = vsel %vm34, %v24, 0
  %v63 = vsel %vm34, %v25, 0
  %v66 = vsel %vm34, %v26, 0
  %v69 = vsel %vm34, %v27, 0
  %v72 = vsel %vm34, %v28, 0
  %v75 = vsel %vm34, %v29, 0
  %v78 = vsel %vm34, %v30, 0
  %v81 = vsel %vm34, %v31, 0
  %83 = vmatprep.subr.mxu0 0.0
  %84 = vmatpush1.msra.mxu0 %v32
  %85 = vmatprep.subr.mxu0 0.0
  %86 = vmatpush1.msra.mxu0 %v33
  %87 = vmatprep.subr.mxu0 0.0
  %88 = vmatpush1.msra.mxu0 0.0
  %89 = vmatprep.subr.mxu0 0.0
  %90 = vmatpush1.msra.mxu0 0.0
  %91 = vmatprep.subr.mxu0 0.0
  %92 = vmatpush1.msra.mxu0 0.0
  %93 = vmatprep.subr.mxu0 0.0
  %94 = vmatpush1.msra.mxu0 0.0
  %95 = vmatprep.subr.mxu0 0.0
  %96 = vmatpush1.msra.mxu0 0.0
  %97 = vmatprep.subr.mxu0 0.0
  %98 = vmatpush1.msra.mxu0 0.0
  %99 = vmatprep.subr.mxu0 0.0
  %100 = vmatpush1.msra.mxu0 0.0
  %101 = vmatprep.subr.mxu0 0.0
  %102 = vmatpush1.msra.mxu0 0.0
  %103 = vmatprep.subr.mxu0 0.0
  %104 = vmatpush1.msra.mxu0 0.0
  %105 = vmatprep.subr.mxu0 0.0
  %106 = vmatpush1.msra.mxu0 0.0
  %107 = vmatprep.subr.mxu0 0.0
  %108 = vmatpush1.msra.mxu0 0.0
  %109 = vmatprep.subr.mxu0 0.0
  %110 = vmatpush1.msra.mxu0 0.0
  %111 = vmatprep.subr.mxu0 0.0
  %112 = vmatpush1.msra.mxu0 0.0
  %113 = vmatprep.subr.mxu0 0.0
  %114 = vmatpush1.msra.mxu0 0.0
  %115 = vmatprep.subr.mxu0 0.0
  %116 = vmatpush1.msra.mxu0 0.0
  %117 = vmatprep.subr.mxu0 0.0
  %118 = vmatpush1.msra.mxu0 0.0
  %119 = vmatprep.subr.mxu0 0.0
  %120 = vmatpush1.msra.mxu0 0.0
  %121 = vmatprep.subr.mxu0 0.0
  %122 = vmatpush1.msra.mxu0 0.0
  %123 = vmatprep.subr.mxu0 0.0
  %124 = vmatpush1.msra.mxu0 0.0
  %125 = vmatprep.subr.mxu0 0.0
  %126 = vmatpush1.msra.mxu0 0.0
  %127 = vmatprep.subr.mxu0 0.0
  %128 = vmatpush1.msra.mxu0 0.0
  %129 = vmatprep.subr.mxu0 0.0
  %130 = vmatpush1.msra.mxu0 0.0
  %131 = vmatprep.subr.mxu0 0.0
  %132 = vmatpush1.msra.mxu0 0.0
  %133 = vmatprep.subr.mxu0 0.0
  %134 = vmatpush1.msra.mxu0 0.0
  %135 = vmatprep.subr.mxu0 0.0
  %136 = vmatpush1.msra.mxu0 0.0
  %137 = vmatprep.subr.mxu0 0.0
  %138 = vmatpush1.msra.mxu0 0.0
  %139 = vmatprep.subr.mxu0 0.0
  %140 = vmatpush1.msra.mxu0 0.0
  %141 = vmatprep.subr.mxu0 0.0
  %142 = vmatpush1.msra.mxu0 0.0
  %143 = vmatprep.subr.mxu0 0.0
  %144 = vmatpush1.msra.mxu0 0.0
  %145 = vmatprep.subr.mxu0 0.0
  %146 = vmatpush1.msra.mxu0 0.0
  %147 = vmatprep.mubr.f32.mxu0 0.0
  %148 = vmatmul.mubr.f32.gmra.mrb[0].mxu0 %v36
  %v149 = vpop.f32.mrb[0].mxu0
  %v150 = vadd.f32 0.0, %v149
  %v151 = vpop.f32.mrb[0].mxu0
  %152 = vmatprep.mubr.f32.mxu0 0.0
  %153 = vmatmul.mubr.f32.gmra.mrb[0].mxu0 %v39
  %v154 = vpop.f32.mrb[0].mxu0
  %v155 = vadd.f32 0.0, %v154
  %v156 = vpop.f32.mrb[0].mxu0
  %157 = vmatprep.mubr.f32.mxu0 0.0
  %158 = vmatmul.mubr.f32.gmra.mrb[0].mxu0 %v42
  %v159 = vpop.f32.mrb[0].mxu0
  %v160 = vadd.f32 0.0, %v159
  %v161 = vpop.f32.mrb[0].mxu0
  %162 = vmatprep.mubr.f32.mxu0 0.0
  %163 = vmatmul.mubr.f32.gmra.mrb[0].mxu0 %v45
  %v164 = vpop.f32.mrb[0].mxu0
  %v165 = vadd.f32 0.0, %v164
  %v166 = vpop.f32.mrb[0].mxu0
  %167 = vmatprep.mubr.f32.mxu0 0.0
  %168 = vmatmul.mubr.f32.gmra.mrb[0].mxu0 %v48
  %v169 = vpop.f32.mrb[0].mxu0
  %v170 = vadd.f32 0.0, %v169
  %v171 = vpop.f32.mrb[0].mxu0
  %172 = vmatprep.mubr.f32.mxu0 0.0
  %173 = vmatmul.mubr.f32.gmra.mrb[0].mxu0 %v51
  %v174 = vpop.f32.mrb[0].mxu0
  %v175 = vadd.f32 0.0, %v174
  %v176 = vpop.f32.mrb[0].mxu0
  %177 = vmatprep.mubr.f32.mxu0 0.0
  %178 = vmatmul.mubr.f32.gmra.mrb[0].mxu0 %v54
  %v179 = vpop.f32.mrb[0].mxu0
  %v180 = vadd.f32 0.0, %v179
  %v181 = vpop.f32.mrb[0].mxu0
  %182 = vmatprep.mubr.f32.mxu0 0.0
  %183 = vmatmul.mubr.f32.gmra.mrb[0].mxu0 %v57
  %v184 = vpop.f32.mrb[0].mxu0
  %v185 = vadd.f32 0.0, %v184
  %v186 = vpop.f32.mrb[0].mxu0
  %187 = vmatprep.mubr.f32.mxu0 0.0
  %188 = vmatmul.mubr.f32.gmra.mrb[0].mxu0 %v60
  %v189 = vpop.f32.mrb[0].mxu0
  %v190 = vadd.f32 0.0, %v189
  %v191 = vpop.f32.mrb[0].mxu0
  %192 = vmatprep.mubr.f32.mxu0 0.0
  %193 = vmatmul.mubr.f32.gmra.mrb[0].mxu0 %v63
  %v194 = vpop.f32.mrb[0].mxu0
  %v195 = vadd.f32 0.0, %v194
  %v196 = vpop.f32.mrb[0].mxu0
  %197 = vmatprep.mubr.f32.mxu0 0.0
  %198 = vmatmul.mubr.f32.gmra.mrb[0].mxu0 %v66
  %v199 = vpop.f32.mrb[0].mxu0
  %v200 = vadd.f32 0.0, %v199
  %v201 = vpop.f32.mrb[0].mxu0
  %202 = vmatprep.mubr.f32.mxu0 0.0
  %203 = vmatmul.mubr.f32.gmra.mrb[0].mxu0 %v69
  %v204 = vpop.f32.mrb[0].mxu0
  %v205 = vadd.f32 0.0, %v204
  %v206 = vpop.f32.mrb[0].mxu0
  %207 = vmatprep.mubr.f32.mxu0 0.0
  %208 = vmatmul.mubr.f32.gmra.mrb[0].mxu0 %v72
  %v209 = vpop.f32.mrb[0].mxu0
  %v210 = vadd.f32 0.0, %v209
  %v211 = vpop.f32.mrb[0].mxu0
  %212 = vmatprep.mubr.f32.mxu0 0.0
  %213 = vmatmul.mubr.f32.gmra.mrb[0].mxu0 %v75
  %v214 = vpop.f32.mrb[0].mxu0
  %v215 = vadd.f32 0.0, %v214
  %v216 = vpop.f32.mrb[0].mxu0
  %217 = vmatprep.mubr.f32.mxu0 0.0
  %218 = vmatmul.mubr.f32.gmra.mrb[0].mxu0 %v78
  %v219 = vpop.f32.mrb[0].mxu0
  %v220 = vadd.f32 0.0, %v219
  %v221 = vpop.f32.mrb[0].mxu0
  %222 = vmatprep.mubr.f32.mxu0 0.0
  %223 = vmatmul.mubr.f32.gmra.mrb[0].mxu0 %v81
  %v224 = vpop.f32.mrb[0].mxu0
  %v225 = vadd.f32 0.0, %v224
  %v226 = vpop.f32.mrb[0].mxu0
  %227 = vdwg.mxu0
  %v228 = vld [vmem:[%s2] sm:$0xff]
  %v229 = vld [vmem:[%s2 + $0x8] sm:$0xff]
  %v230 = vld [vmem:[%s2 + $0x10] sm:$0xff]
  %v231 = vld [vmem:[%s2 + $0x18] sm:$0xff]
  %v232 = vld [vmem:[%s2 + $0x20] sm:$0xff]
  %v233 = vld [vmem:[%s2 + $0x28] sm:$0xff]
  %v234 = vld [vmem:[%s2 + $0x30] sm:$0xff]
  %v235 = vld [vmem:[%s2 + $0x38] sm:$0xff]
  %vm236 = vcmask 523264
  %v238 = vsel %vm236, %v150, 0
  %v241 = vsel %vm236, %v155, 0
  %v244 = vsel %vm236, %v160, 0
  %v247 = vsel %vm236, %v165, 0
  %v250 = vsel %vm236, %v170, 0
  %v253 = vsel %vm236, %v175, 0
  %v256 = vsel %vm236, %v180, 0
  %v259 = vsel %vm236, %v185, 0
  %v262 = vsel %vm236, %v190, 0
  %v265 = vsel %vm236, %v195, 0
  %v268 = vsel %vm236, %v200, 0
  %v271 = vsel %vm236, %v205, 0
  %v274 = vsel %vm236, %v210, 0
  %v277 = vsel %vm236, %v215, 0
  %v280 = vsel %vm236, %v220, 0
  %v283 = vsel %vm236, %v225, 0
  %285 = vmatprep.subr.mxu0 0.0
  %286 = vmatpush1.msra.mxu0 %v228
  %287 = vmatprep.subr.mxu0 0.0
  %288 = vmatpush1.msra.mxu0 %v229
  %289 = vmatprep.subr.mxu0 0.0
  %290 = vmatpush1.msra.mxu0 %v230
  %291 = vmatprep.subr.mxu0 0.0
  %292 = vmatpush1.msra.mxu0 %v231
  %293 = vmatprep.subr.mxu0 0.0
  %294 = vmatpush1.msra.mxu0 %v232
  %295 = vmatprep.subr.mxu0 0.0
  %296 = vmatpush1.msra.mxu0 %v233
  %297 = vmatprep.subr.mxu0 0.0
  %298 = vmatpush1.msra.mxu0 %v234
  %299 = vmatprep.subr.mxu0 0.0
  %300 = vmatpush1.msra.mxu0 %v235
  %301 = vmatprep.subr.mxu0 0.0
  %302 = vmatpush1.msra.mxu0 0.0
  %303 = vmatprep.subr.mxu0 0.0
  %304 = vmatpush1.msra.mxu0 0.0
  %305 = vmatprep.subr.mxu0 0.0
  %306 = vmatpush1.msra.mxu0 0.0
  %307 = vmatprep.subr.mxu0 0.0
  %308 = vmatpush1.msra.mxu0 0.0
  %309 = vmatprep.subr.mxu0 0.0
  %310 = vmatpush1.msra.mxu0 0.0
  %311 = vmatprep.subr.mxu0 0.0
  %312 = vmatpush1.msra.mxu0 0.0
  %313 = vmatprep.subr.mxu0 0.0
  %314 = vmatpush1.msra.mxu0 0.0
  %315 = vmatprep.subr.mxu0 0.0
  %316 = vmatpush1.msra.mxu0 0.0
  %317 = vmatprep.subr.mxu0 0.0
  %318 = vmatpush1.msra.mxu0 0.0
  %319 = vmatprep.subr.mxu0 0.0
  %320 = vmatpush1.msra.mxu0 0.0
  %321 = vmatprep.subr.mxu0 0.0
  %322 = vmatpush1.msra.mxu0 0.0
  %323 = vmatprep.subr.mxu0 0.0
  %324 = vmatpush1.msra.mxu0 0.0
  %325 = vmatprep.subr.mxu0 0.0
  %326 = vmatpush1.msra.mxu0 0.0
  %327 = vmatprep.subr.mxu0 0.0
  %328 = vmatpush1.msra.mxu0 0.0
  %329 = vmatprep.subr.mxu0 0.0
  %330 = vmatpush1.msra.mxu0 0.0
  %331 = vmatprep.subr.mxu0 0.0
  %332 = vmatpush1.msra.mxu0 0.0
  %333 = vmatprep.subr.mxu0 0.0
  %334 = vmatpush1.msra.mxu0 0.0
  %335 = vmatprep.subr.mxu0 0.0
  %336 = vmatpush1.msra.mxu0 0.0
  %337 = vmatprep.subr.mxu0 0.0
  %338 = vmatpush1.msra.mxu0 0.0
  %339 = vmatprep.subr.mxu0 0.0
  %340 = vmatpush1.msra.mxu0 0.0
  %341 = vmatprep.subr.mxu0 0.0
  %342 = vmatpush1.msra.mxu0 0.0
  %343 = vmatprep.subr.mxu0 0.0
  %344 = vmatpush1.msra.mxu0 0.0
  %345 = vmatprep.subr.mxu0 0.0
  %346 = vmatpush1.msra.mxu0 0.0
  %347 = vmatprep.subr.mxu0 0.0
  %348 = vmatpush1.msra.mxu0 0.0
  %349 = vmatprep.mubr.f32.mxu0 0.0
  %350 = vmatmul.mubr.f32.gmra.mrb[0].mxu0 %v238
  %v351 = vpop.f32.mrb[0].mxu0
  %v352 = vadd.f32 0.0, %v351
  %v353 = vpop.f32.mrb[0].mxu0
  %354 = vmatprep.mubr.f32.mxu0 0.0
  %355 = vmatmul.mubr.f32.gmra.mrb[0].mxu0 %v241
  %v356 = vpop.f32.mrb[0].mxu0
  %v357 = vadd.f32 0.0, %v356
  %v358 = vpop.f32.mrb[0].mxu0
  %359 = vmatprep.mubr.f32.mxu0 0.0
  %360 = vmatmul.mubr.f32.gmra.mrb[0].mxu0 %v244
  %v361 = vpop.f32.mrb[0].mxu0
  %v362 = vadd.f32 0.0, %v361
  %v363 = vpop.f32.mrb[0].mxu0
  %364 = vmatprep.mubr.f32.mxu0 0.0
  %365 = vmatmul.mubr.f32.gmra.mrb[0].mxu0 %v247
  %v366 = vpop.f32.mrb[0].mxu0
  %v367 = vadd.f32 0.0, %v366
  %v368 = vpop.f32.mrb[0].mxu0
  %369 = vmatprep.mubr.f32.mxu0 0.0
  %370 = vmatmul.mubr.f32.gmra.mrb[0].mxu0 %v250
  %v371 = vpop.f32.mrb[0].mxu0
  %v372 = vadd.f32 0.0, %v371
  %v373 = vpop.f32.mrb[0].mxu0
  %374 = vmatprep.mubr.f32.mxu0 0.0
  %375 = vmatmul.mubr.f32.gmra.mrb[0].mxu0 %v253
  %v376 = vpop.f32.mrb[0].mxu0
  %v377 = vadd.f32 0.0, %v376
  %v378 = vpop.f32.mrb[0].mxu0
  %379 = vmatprep.mubr.f32.mxu0 0.0
  %380 = vmatmul.mubr.f32.gmra.mrb[0].mxu0 %v256
  %v381 = vpop.f32.mrb[0].mxu0
  %v382 = vadd.f32 0.0, %v381
  %v383 = vpop.f32.mrb[0].mxu0
  %384 = vmatprep.mubr.f32.mxu0 0.0
  %385 = vmatmul.mubr.f32.gmra.mrb[0].mxu0 %v259
  %v386 = vpop.f32.mrb[0].mxu0
  %v387 = vadd.f32 0.0, %v386
  %v388 = vpop.f32.mrb[0].mxu0
  %389 = vmatprep.mubr.f32.mxu0 0.0
  %390 = vmatmul.mubr.f32.gmra.mrb[0].mxu0 %v262
  %v391 = vpop.f32.mrb[0].mxu0
  %v392 = vadd.f32 0.0, %v391
  %v393 = vpop.f32.mrb[0].mxu0
  %394 = vmatprep.mubr.f32.mxu0 0.0
  %395 = vmatmul.mubr.f32.gmra.mrb[0].mxu0 %v265
  %v396 = vpop.f32.mrb[0].mxu0
  %v397 = vadd.f32 0.0, %v396
  %v398 = vpop.f32.mrb[0].mxu0
  %399 = vmatprep.mubr.f32.mxu0 0.0
  %400 = vmatmul.mubr.f32.gmra.mrb[0].mxu0 %v268
  %v401 = vpop.f32.mrb[0].mxu0
  %v402 = vadd.f32 0.0, %v401
  %v403 = vpop.f32.mrb[0].mxu0
  %404 = vmatprep.mubr.f32.mxu0 0.0
  %405 = vmatmul.mubr.f32.gmra.mrb[0].mxu0 %v271
  %v406 = vpop.f32.mrb[0].mxu0
  %v407 = vadd.f32 0.0, %v406
  %v408 = vpop.f32.mrb[0].mxu0
  %409 = vmatprep.mubr.f32.mxu0 0.0
  %410 = vmatmul.mubr.f32.gmra.mrb[0].mxu0 %v274
  %v411 = vpop.f32.mrb[0].mxu0
  %v412 = vadd.f32 0.0, %v411
  %v413 = vpop.f32.mrb[0].mxu0
  %414 = vmatprep.mubr.f32.mxu0 0.0
  %415 = vmatmul.mubr.f32.gmra.mrb[0].mxu0 %v277
  %v416 = vpop.f32.mrb[0].mxu0
  %v417 = vadd.f32 0.0, %v416
  %v418 = vpop.f32.mrb[0].mxu0
  %419 = vmatprep.mubr.f32.mxu0 0.0
  %420 = vmatmul.mubr.f32.gmra.mrb[0].mxu0 %v280
  %v421 = vpop.f32.mrb[0].mxu0
  %v422 = vadd.f32 0.0, %v421
  %v423 = vpop.f32.mrb[0].mxu0
  %424 = vmatprep.mubr.f32.mxu0 0.0
  %425 = vmatmul.mubr.f32.gmra.mrb[0].mxu0 %v283
  %v426 = vpop.f32.mrb[0].mxu0
  %v427 = vadd.f32 0.0, %v426
  %v428 = vpop.f32.mrb[0].mxu0
  %429 = vdwg.mxu0
  %430 = vst.msk [vmem:[%s4] sm:$0xff] %vm34, %v352
  %431 = vst.msk [vmem:[%s4 + $0x8] sm:$0xff] %vm34, %v357
  %432 = vst.msk [vmem:[%s4 + $0x10] sm:$0xff] %vm34, %v362
  %433 = vst.msk [vmem:[%s4 + $0x18] sm:$0xff] %vm34, %v367
  %434 = vst.msk [vmem:[%s4 + $0x20] sm:$0xff] %vm34, %v372
  %435 = vst.msk [vmem:[%s4 + $0x28] sm:$0xff] %vm34, %v377
  %436 = vst.msk [vmem:[%s4 + $0x30] sm:$0xff] %vm34, %v382
  %437 = vst.msk [vmem:[%s4 + $0x38] sm:$0xff] %vm34, %v387
  %438 = vst.msk [vmem:[%s4 + $0x40] sm:$0xff] %vm34, %v392
  %439 = vst.msk [vmem:[%s4 + $0x48] sm:$0xff] %vm34, %v397
  %440 = vst.msk [vmem:[%s4 + $0x50] sm:$0xff] %vm34, %v402
  %441 = vst.msk [vmem:[%s4 + $0x58] sm:$0xff] %vm34, %v407
  %442 = vst.msk [vmem:[%s4 + $0x60] sm:$0xff] %vm34, %v412
  %443 = vst.msk [vmem:[%s4 + $0x68] sm:$0xff] %vm34, %v417
  %444 = vst.msk [vmem:[%s4 + $0x70] sm:$0xff] %vm34, %v422
  %445 = vst.msk [vmem:[%s4 + $0x78] sm:$0xff] %vm34, %v427
  %v446 = vpack.c.bf16 %v155, %v150
  %v447 = vpack.c.bf16 %v165, %v160
  %v448 = vpack.c.bf16 %v175, %v170
  %v449 = vpack.c.bf16 %v185, %v180
  %v450 = vpack.c.bf16 %v195, %v190
  %v451 = vpack.c.bf16 %v205, %v200
  %v452 = vpack.c.bf16 %v215, %v210
  %v453 = vpack.c.bf16 %v225, %v220
  %v462 = vunpack.c.l.b16 %v446
  %v463 = vunpack.c.h.b16 %v446
  %v464 = vunpack.c.l.b16 %v447
  %v465 = vunpack.c.h.b16 %v447
  %v466 = vunpack.c.l.b16 %v448
  %v467 = vunpack.c.h.b16 %v448
  %v468 = vunpack.c.l.b16 %v449
  %v469 = vunpack.c.h.b16 %v449
  %v470 = vunpack.c.l.b16 %v450
  %v471 = vunpack.c.h.b16 %v450
  %v472 = vunpack.c.l.b16 %v451
  %v473 = vunpack.c.h.b16 %v451
  %v474 = vunpack.c.l.b16 %v452
  %v475 = vunpack.c.h.b16 %v452
  %v476 = vunpack.c.l.b16 %v453
  %v477 = vunpack.c.h.b16 %v453
  %v478 = vpack.c.b16 %v462, %v462
  %v479 = vpack.c.b16 %v463, %v463
  %v480 = vpack.c.b16 %v464, %v464
  %v481 = vpack.c.b16 %v465, %v465
  %v482 = vpack.c.b16 %v466, %v466
  %v483 = vpack.c.b16 %v467, %v467
  %v484 = vpack.c.b16 %v468, %v468
  %v485 = vpack.c.b16 %v469, %v469
  %v486 = vpack.c.b16 %v470, %v470
  %v487 = vpack.c.b16 %v471, %v471
  %v488 = vpack.c.b16 %v472, %v472
  %v489 = vpack.c.b16 %v473, %v473
  %v490 = vpack.c.b16 %v474, %v474
  %v491 = vpack.c.b16 %v475, %v475
  %v492 = vpack.c.b16 %v476, %v476
  %v493 = vpack.c.b16 %v477, %v477
  %vm510 = vcmask 519168
  %511 = vst.msk [vmem:[%s3] sm:$0xf] %vm510, %v478
  %512 = vst.msk [vmem:[%s3 + $0x4] sm:$0xf] %vm510, %v479
  %513 = vst.msk [vmem:[%s3 + $0x8] sm:$0xf] %vm510, %v480
  %514 = vst.msk [vmem:[%s3 + $0xc] sm:$0xf] %vm510, %v481
  %515 = vst.msk [vmem:[%s3 + $0x10] sm:$0xf] %vm510, %v482
  %516 = vst.msk [vmem:[%s3 + $0x14] sm:$0xf] %vm510, %v483
  %517 = vst.msk [vmem:[%s3 + $0x18] sm:$0xf] %vm510, %v484
  %518 = vst.msk [vmem:[%s3 + $0x1c] sm:$0xf] %vm510, %v485
  %519 = vst.msk [vmem:[%s3 + $0x20] sm:$0xf] %vm510, %v486
  %520 = vst.msk [vmem:[%s3 + $0x24] sm:$0xf] %vm510, %v487
  %521 = vst.msk [vmem:[%s3 + $0x28] sm:$0xf] %vm510, %v488
  %522 = vst.msk [vmem:[%s3 + $0x2c] sm:$0xf] %vm510, %v489
  %523 = vst.msk [vmem:[%s3 + $0x30] sm:$0xf] %vm510, %v490
  %524 = vst.msk [vmem:[%s3 + $0x34] sm:$0xf] %vm510, %v491
  %525 = vst.msk [vmem:[%s3 + $0x38] sm:$0xf] %vm510, %v492
  %526 = vst.msk [vmem:[%s3 + $0x3c] sm:$0xf] %vm510, %v493
  // Predicated region
  $region14: #{tpu_custom_call.1} parent=0 // pred_check
    _
  $region15: #{tpu_custom_call.1} parent=0 // pred_check_branch
    %528 = sbr.rel (0) target = $region17
  $region16: #{tpu_custom_call.1} parent=0 // pred_region
    _
  $region17: #{tpu_custom_call.1} parent=0 // pred_fallthru
    _
  // Predicated region
  $region18: #{tpu_custom_call.1} parent=0 // pred_check
    _
  $region19: #{tpu_custom_call.1} parent=0 // pred_check_branch
    %530 = sbr.rel (0) target = $region21
  $region20: #{tpu_custom_call.1} parent=0 // pred_region
    _
  $region21: #{tpu_custom_call.1} parent=0 // pred_fallthru
    _
  // Predicated region
  $region22: #{tpu_custom_call.1} parent=0 // pred_check
    _
  $region23: #{tpu_custom_call.1} parent=0 // pred_check_branch
    %532 = sbr.rel (0) target = $region25
  $region24: #{tpu_custom_call.1} parent=0 // pred_region
    _
  $region25: #{tpu_custom_call.1} parent=0 // pred_fallthru
    _
  // Predicated region
  $region26: #{tpu_custom_call.1} parent=0 // pred_check
    _
  $region27: #{tpu_custom_call.1} parent=0 // pred_check_branch
    %534 = sbr.rel (0) target = $region29
  $region28: #{tpu_custom_call.1} parent=0 // pred_region
    _
  $region29: #{tpu_custom_call.1} parent=0 // pred_fallthru
    _

</llo_original>
